<compile_context>
chip_gen: v5e
topology: v5e:2x2
jax: 0.10.0
libtpu: 0.0.40
codegen_flags: <defaults>
</compile_context>

<pallas_src>
import functools

import jax
import jax.numpy as jnp
from jax.experimental import pallas as pl
from jax.experimental.pallas import tpu as pltpu

EXIT_LAYER = -8
NUM_CLASSES = 10
BN_EPS = 1e-5
HEAD_CH = 1280
EXIT_CHANNEL = 96          # detail_layers[exit_layer - 1].out_channels for exit_layer=-8
N_BLK = 8                  # images per output sublane-block


def _round_up(x, m):
    return (x + m - 1) // m * m


# ---------------------------------------------------------------------------
# Plain-JAX glue: truncated MobileNetV2 backbone (features[0:13]), NHWC layout
# so the head needs no transpose.  Backbone BatchNorms keep PyTorch default
# init (identity in eval mode) and fold away.
# ---------------------------------------------------------------------------

# (in_ch, out_ch, stride, expand_ratio) for MobileNetV2 features[1:13]
_BLOCK_CFG = [
    (32, 16, 1, 1),
    (16, 24, 2, 6),
    (24, 24, 1, 6),
    (24, 32, 2, 6),
    (32, 32, 1, 6),
    (32, 32, 1, 6),
    (32, 64, 2, 6),
    (64, 64, 1, 6),
    (64, 64, 1, 6),
    (64, 64, 1, 6),
    (64, 96, 1, 6),
    (96, 96, 1, 6),
]


def _conv(x, w, stride, pad, groups=1):
    return jax.lax.conv_general_dilated(
        x, w, window_strides=(stride, stride),
        padding=[(pad, pad), (pad, pad)],
        dimension_numbers=("NHWC", "HWIO", "NHWC"),
        feature_group_count=groups)


def _relu6(x):
    return jnp.clip(x, 0.0, 6.0)


def _init_conv(key, out_c, in_c_per_group, k):
    fan_in = in_c_per_group * k * k
    return (jax.random.normal(key, (k, k, in_c_per_group, out_c), jnp.float32)
            * (2.0 / fan_in) ** 0.5)


def init_backbone(key):
    keys = iter(jax.random.split(key, 64))
    params = {"stem": _init_conv(next(keys), 32, 3, 3), "blocks": []}
    for (inp, oup, stride, t) in _BLOCK_CFG:
        hidden = inp * t
        blk = {}
        if t != 1:
            blk["expand"] = _init_conv(next(keys), hidden, inp, 1)
        blk["dw"] = _init_conv(next(keys), hidden, 1, 3)       # depthwise
        blk["project"] = _init_conv(next(keys), oup, hidden, 1)
        params["blocks"].append(blk)
    return params


def backbone_forward(x_nchw, params):
    # PyTorch-style NCHW input -> NHWC for TPU-friendly convs.
    x = jnp.transpose(x_nchw, (0, 2, 3, 1))
    y = _relu6(_conv(x, params["stem"], stride=2, pad=1))      # features[0]
    for (inp, oup, stride, t), blk in zip(_BLOCK_CFG, params["blocks"]):
        out = y
        if t != 1:
            out = _relu6(_conv(out, blk["expand"], stride=1, pad=0))
        hidden = out.shape[-1]
        out = _relu6(_conv(out, blk["dw"], stride=stride, pad=1, groups=hidden))
        out = _conv(out, blk["project"], stride=1, pad=0)
        if stride == 1 and inp == oup:
            out = out + y
        y = out
    # Cast to bf16 in the backbone epilogue so the head-side layout pad is a
    # bf16 (half-bandwidth) copy rather than an extra f32 round trip.
    return y.astype(jnp.bfloat16)  # (N, H/16, W/16, 96), NHWC


# ---------------------------------------------------------------------------
# Pallas kernel: early-exit head (conv1x1 + folded BN + ReLU6 + avg-pool sum)
#   Conv2d(96->1280, 1x1, no bias) -> BatchNorm2d(1280) -> ReLU6 ->
#   AdaptiveAvgPool2d((1,1))  [pooled SUM; the 1/HW mean, Dropout(identity in
#   eval) and the Linear(1280->10) run in XLA afterwards]
# ---------------------------------------------------------------------------

def _early_exit_pool_kernel(x_ref, p_ref, w1_ref, shift_ref, o_ref):
    t = pl.program_id(1)

    @pl.when(t == 0)
    def _():
        o_ref[...] = jnp.zeros_like(o_ref)

    # 1x1 conv: (t_rows, 128) bf16 @ (128, 1280) bf16 -> f32 on the MXU.
    y = jnp.dot(x_ref[0], w1_ref[...], preferred_element_type=jnp.float32)
    # Eval-mode BatchNorm (scale folded into w1) + ReLU6.  No row masking:
    # padded rows carry zero weight in the pooling matrix below.
    y = jnp.clip(y + shift_ref[...], 0.0, 6.0)
    # AdaptiveAvgPool sum as an MXU matmul: (8, t_rows) ones-block-diagonal
    # @ (t_rows, 1280) -> per-image channel sums, accumulated in the resident
    # (8, 1280) f32 output block (no cross-sublane VPU reductions, no scratch).
    o_ref[...] += jnp.dot(p_ref[...], y.astype(jnp.bfloat16),
                          preferred_element_type=jnp.float32)


def init_head(key):
    ks = jax.random.split(key, 7)
    return {
        "conv_w": jax.random.normal(ks[0], (HEAD_CH, EXIT_CHANNEL, 1, 1), jnp.float32)
                  * (2.0 / EXIT_CHANNEL) ** 0.5,
        "bn_gamma": jax.random.uniform(ks[1], (HEAD_CH,), jnp.float32, 0.5, 1.5),
        "bn_beta": jax.random.normal(ks[2], (HEAD_CH,), jnp.float32) * 0.1,
        "bn_mean": jax.random.normal(ks[3], (HEAD_CH,), jnp.float32) * 0.1,
        "bn_var": jax.random.uniform(ks[4], (HEAD_CH,), jnp.float32, 0.5, 1.5),
        "lin_w": jax.random.normal(ks[5], (NUM_CLASSES, HEAD_CH), jnp.float32)
                 * (1.0 / HEAD_CH) ** 0.5,
        "lin_b": jax.random.normal(ks[6], (NUM_CLASSES,), jnp.float32) * 0.01,
    }


def early_exit_head(feats_nhwc, head, *, t_rows_max=1024):
    # t_rows_max must be a multiple of 128 (pooling-matrix lane dim when the
    # per-image-block rows are split across tiles).  At 1024 rows the streamed
    # x tile is 256 KiB bf16 -- VMEM is a non-issue on v5e/v6e (128 MiB) and
    # v7x (64 MiB) alike.
    assert t_rows_max % 128 == 0
    n, h, w, c = feats_nhwc.shape
    hw = h * w
    c_pad = _round_up(c, 128)                       # 96 -> 128 (full-lane contraction)
    n_pad = _round_up(n, N_BLK)
    n_blocks = n_pad // N_BLK
    rows_per_block = N_BLK * hw                     # rows of one 8-image block
    if rows_per_block <= t_rows_max:
        t_rows = _round_up(rows_per_block, 8)       # single tile == full extent
        rows_pad = t_rows
    else:
        t_rows = t_rows_max
        rows_pad = _round_up(rows_per_block, t_rows)
    num_tiles = rows_pad // t_rows

    # Flatten N x HW into 8-image blocks of rows: (n_blocks, rows_pad, c_pad) bf16.
    x3d = feats_nhwc.astype(jnp.bfloat16).reshape(n, hw, c)
    x3d = jnp.pad(x3d, ((0, n_pad - n), (0, 0), (0, c_pad - c)))
    x_blk = x3d.reshape(n_blocks, rows_per_block, c_pad)
    x_blk = jnp.pad(x_blk, ((0, 0), (0, rows_pad - rows_per_block), (0, 0)))

    # Block-diagonal pooling matrix (same for every image block): P[i, r] = 1
    # iff flattened row r belongs to image i of the block; padded rows -> 0.
    row_img = jnp.arange(rows_pad, dtype=jnp.int32) // hw
    pool_mat = (row_img[None, :] ==
                jnp.arange(N_BLK, dtype=jnp.int32)[:, None]).astype(jnp.bfloat16)

    # Fold eval-mode BN scale into the 1x1-conv weight; keep shift in f32.
    scale = head["bn_gamma"] * jax.lax.rsqrt(head["bn_var"] + BN_EPS)        # (1280,)
    shift = (head["bn_beta"] - head["bn_mean"] * scale).reshape(1, HEAD_CH)   # f32
    w1 = head["conv_w"].reshape(HEAD_CH, c).T * scale[None, :]                # (96, 1280)
    w1 = jnp.pad(w1, ((0, c_pad - c), (0, 0))).astype(jnp.bfloat16)           # (128, 1280)

    flops = 2 * n_blocks * num_tiles * t_rows * HEAD_CH * (c_pad + N_BLK)
    bytes_accessed = (x_blk.size * 2 + n_blocks * pool_mat.size * 2
                      + w1.size * 2 + shift.size * 4 + n_pad * HEAD_CH * 4)

    pooled_sums = pl.pallas_call(
        _early_exit_pool_kernel,
        out_shape=jax.ShapeDtypeStruct((n_pad, HEAD_CH), jnp.float32),
        grid=(n_blocks, num_tiles),
        in_specs=[
            # Streamed activation tile: (1, t_rows, 128) bf16, double-buffered.
            pl.BlockSpec((1, t_rows, c_pad), lambda b, t: (b, t, 0)),
            # Pooling-matrix column tile (same for every image block).
            pl.BlockSpec((N_BLK, t_rows), lambda b, t: (0, t)),
            # Resident operands (constant block index -> fetched once).
            pl.BlockSpec((c_pad, HEAD_CH), lambda b, t: (0, 0)),
            pl.BlockSpec((1, HEAD_CH), lambda b, t: (0, 0)),
        ],
        # Output block is the per-image-block pooled-sum accumulator, resident
        # across the row-tile (reduction) axis; lane-dense at 1280.
        out_specs=pl.BlockSpec((N_BLK, HEAD_CH), lambda b, t: (b, 0)),
        compiler_params=pltpu.CompilerParams(
            # image-block axis shards across v7x's 2 TensorCores; the row-tile
            # axis is the (sequential) pooling reduction.
            dimension_semantics=("parallel", "arbitrary")),
        cost_estimate=pl.CostEstimate(
            flops=int(flops), transcendentals=0,
            bytes_accessed=int(bytes_accessed)),
    )(x_blk, pool_mat, w1, shift)

    # AdaptiveAvgPool mean, Dropout(p=0.2) = identity in eval, and the tiny
    # Linear(1280 -> 10) as a batched XLA GEMM (lifted out of the kernel).
    pooled = pooled_sums[:n] * (1.0 / hw)                                     # (n, 1280)
    logits = jnp.dot(pooled, head["lin_w"].T,
                     precision=jax.lax.Precision.HIGHEST) + head["lin_b"]
    return logits


def early_exit_mobilenet_forward(x, backbone_params, head_params):
    feats = backbone_forward(x, backbone_params)    # self.features(x), NHWC
    return early_exit_head(feats, head_params)      # self.early_exit(feats)


if __name__ == "__main__":
    root = jax.random.PRNGKey(0)
    k_bb, k_head, k_x = jax.random.split(root, 3)
    backbone_params = init_backbone(k_bb)
    head_params = init_head(k_head)

    # Small NCHW input (2, 3, 32, 32) -> features (2, 2, 2, 96) -> logits (2, 10)
    x = jax.random.normal(k_x, (2, 3, 32, 32), jnp.float32)

    fwd = jax.jit(early_exit_mobilenet_forward)
    logits = fwd(x, backbone_params, head_params)
    jax.block_until_ready(logits)
    assert logits.shape == (2, NUM_CLASSES), logits.shape
    assert bool(jnp.all(jnp.isfinite(logits)))
    print("KERNEL_OK")
</pallas_src>

<mosaic_0001>
module attributes {stable_mosaic.version = 11 : i64} {
  func.func @_early_exit_pool_kernel(%arg0: i32, %arg1: i32, %arg2: memref<1x32x128xbf16, #tpu.memory_space<vmem>>, %arg3: memref<8x32xbf16, #tpu.memory_space<vmem>>, %arg4: memref<128x1280xbf16, #tpu.memory_space<vmem>>, %arg5: memref<1x1280xf32, #tpu.memory_space<vmem>>, %arg6: memref<8x1280xf32, #tpu.memory_space<vmem>>) attributes {dimension_semantics = [#tpu.dimension_semantics<parallel>, #tpu.dimension_semantics<arbitrary>], iteration_bounds = array<i64: 1, 1>, scalar_prefetch = 0 : i64, scratch_operands = 0 : i64, tpu.core_type = #tpu.core_type<tc>, window_params = [{transform_indices = @transform_0, window_bounds = array<i64: 1, 32, 128>}, {transform_indices = @transform_1, window_bounds = array<i64: 8, 32>}, {pipeline_mode = #tpu.pipeline_mode<synchronous>, transform_indices = @transform_2, window_bounds = array<i64: 128, 1280>}, {pipeline_mode = #tpu.pipeline_mode<synchronous>, transform_indices = @transform_3, window_bounds = array<i64: 1, 1280>}, {transform_indices = @transform_4, window_bounds = array<i64: 8, 1280>}]} {
    %c0_i32 = arith.constant 0 : i32
    %0 = arith.cmpi eq, %arg1, %c0_i32 : i32
    %1 = arith.extui %0 : i1 to i32
    %c0_i32_0 = arith.constant 0 : i32
    %2 = arith.cmpi ne, %1, %c0_i32_0 : i32
    scf.if %2 {
      %cst_16 = arith.constant 0.000000e+00 : f32
      %20 = vector.broadcast %cst_16 : f32 to vector<8x1280xf32>
      %c0_17 = arith.constant 0 : index
      %c0_18 = arith.constant 0 : index
      %21 = vector.load %arg6[%c0_17, %c0_18] : memref<8x1280xf32, #tpu.memory_space<vmem>>, vector<8x1280xf32>
      tpu.vector_store %arg6[%c0_17, %c0_18], %20 {strides = array<i32>} : memref<8x1280xf32, #tpu.memory_space<vmem>>, vector<8x1280xf32>,
    } else {
    }
    %c0 = arith.constant 0 : index
    %c0_1 = arith.constant 0 : index
    %c0_2 = arith.constant 0 : index
    %3 = vector.load %arg2[%c0, %c0_1, %c0_2] : memref<1x32x128xbf16, #tpu.memory_space<vmem>>, vector<1x32x128xbf16>
    %4 = vector.shape_cast %3 : vector<1x32x128xbf16> to vector<32x128xbf16>
    %c0_3 = arith.constant 0 : index
    %c0_4 = arith.constant 0 : index
    %5 = vector.load %arg4[%c0_3, %c0_4] : memref<128x1280xbf16, #tpu.memory_space<vmem>>, vector<128x1280xbf16>
    %cst = arith.constant dense<0.000000e+00> : vector<32x1280xf32>
    %6 = tpu.matmul %4, %5, %cst {dimension_numbers = #tpu.dot_dimension_numbers<[1], [0], [0], [1], [0, 0, 1, 1], [], []>} : vector<32x128xbf16>, vector<128x1280xbf16>, vector<32x1280xf32> -> vector<32x1280xf32>
    %c0_5 = arith.constant 0 : index
    %c0_6 = arith.constant 0 : index
    %7 = vector.load %arg5[%c0_5, %c0_6] : memref<1x1280xf32, #tpu.memory_space<vmem>>, vector<1x1280xf32>
    %8 = vector.broadcast %7 : vector<1x1280xf32> to vector<32x1280xf32>
    %9 = arith.addf %6, %8 : vector<32x1280xf32>
    %cst_7 = arith.constant 0.000000e+00 : f32
    %cst_8 = arith.constant 6.000000e+00 : f32
    %10 = vector.broadcast %cst_7 : f32 to vector<32x1280xf32>
    %11 = arith.maximumf %10, %9 : vector<32x1280xf32>
    %12 = vector.broadcast %cst_8 : f32 to vector<32x1280xf32>
    %13 = arith.minimumf %12, %11 : vector<32x1280xf32>
    %c0_9 = arith.constant 0 : index
    %c0_10 = arith.constant 0 : index
    %14 = vector.load %arg6[%c0_9, %c0_10] : memref<8x1280xf32, #tpu.memory_space<vmem>>, vector<8x1280xf32>
    %c0_11 = arith.constant 0 : index
    %c0_12 = arith.constant 0 : index
    %15 = vector.load %arg3[%c0_11, %c0_12] : memref<8x32xbf16, #tpu.memory_space<vmem>>, vector<8x32xbf16>
    %16 = arith.truncf %13 : vector<32x1280xf32> to vector<32x1280xbf16>
    %cst_13 = arith.constant dense<0.000000e+00> : vector<8x1280xf32>
    %17 = tpu.matmul %15, %16, %cst_13 {dimension_numbers = #tpu.dot_dimension_numbers<[1], [0], [0], [1], [0, 0, 1, 1], [], []>} : vector<8x32xbf16>, vector<32x1280xbf16>, vector<8x1280xf32> -> vector<8x1280xf32>
    %18 = arith.addf %14, %17 : vector<8x1280xf32>
    %c0_14 = arith.constant 0 : index
    %c0_15 = arith.constant 0 : index
    %19 = vector.load %arg6[%c0_14, %c0_15] : memref<8x1280xf32, #tpu.memory_space<vmem>>, vector<8x1280xf32>
    tpu.vector_store %arg6[%c0_14, %c0_15], %18 {strides = array<i32>} : memref<8x1280xf32, #tpu.memory_space<vmem>>, vector<8x1280xf32>,
    return
  }
  func.func @transform_0(%arg0: i32, %arg1: i32) -> (i32, i32, i32) {
    %c0_i32 = arith.constant 0 : i32
    %c0_i32_0 = arith.constant 0 : i32
    return %arg0, %arg1, %c0_i32 : i32, i32, i32
  }
  func.func @transform_1(%arg0: i32, %arg1: i32) -> (i32, i32) {
    %c0_i32 = arith.constant 0 : i32
    %c0_i32_0 = arith.constant 0 : i32
    return %c0_i32, %arg1 : i32, i32
  }
  func.func @transform_2(%arg0: i32, %arg1: i32) -> (i32, i32) {
    %c0_i32 = arith.constant 0 : i32
    %c0_i32_0 = arith.constant 0 : i32
    %c0_i32_1 = arith.constant 0 : i32
    return %c0_i32, %c0_i32_0 : i32, i32
  }
  func.func @transform_3(%arg0: i32, %arg1: i32) -> (i32, i32) {
    %c0_i32 = arith.constant 0 : i32
    %c0_i32_0 = arith.constant 0 : i32
    %c0_i32_1 = arith.constant 0 : i32
    return %c0_i32, %c0_i32_0 : i32, i32
  }
  func.func @transform_4(%arg0: i32, %arg1: i32) -> (i32, i32) {
    %c0_i32 = arith.constant 0 : i32
    %c0_i32_0 = arith.constant 0 : i32
    return %arg0, %c0_i32 : i32, i32
  }
}

</mosaic_0001>

<llo_original>
// kernel: early_exit_mobilenet_forward.1
$region0: #{early_exit_mobilenet_forward.1}
  #allocation0 [shape = 'u32[]', space=smem, size = 0x4, offset = 0x4, fixed_abs, tag = 'smem constant byte address 0x4 - core index']
  #allocation1 [shape = 'u32[72,128]{1,0:T(1,128)}', space=vmem, size = 0x9000, scoped, tag = 'internal scratch']
  %s0 = inlined_call_operand.vmem [shape: bf16[1,32,128], index: 0, kind: input, shape index: {}]
  %s1 = inlined_call_operand.vmem [shape: bf16[8,32], index: 1, kind: input, shape index: {}]
  %s2 = inlined_call_operand.vmem [shape: bf16[128,1280], index: 2, kind: input, shape index: {}]
  %s3 = inlined_call_operand.vmem [shape: f32[1,1280], index: 3, kind: input, shape index: {}]
  %s4 = inlined_call_operand.vmem [shape: f32[8,1280], index: 4, kind: output, shape index: {}]
  %s5 = sld [smem:[#allocation0]]
  $region30: #{early_exit_mobilenet_forward.1} parent=0
    _
  %s7 = ssub.s32 1, %s5
  %s8 = scalar_select 0, %s7, %s5
  // Predicated region
  $region2: #{early_exit_mobilenet_forward.1} parent=0 // pred_check
    _
  $region3: #{early_exit_mobilenet_forward.1} parent=0 // pred_check_branch
    %10 = sbr.rel (0) target = $region5
  $region4: #{early_exit_mobilenet_forward.1} parent=0 // pred_region
    _
  $region5: #{early_exit_mobilenet_forward.1} parent=0 // pred_fallthru
    _
  // Predicated region
  $region6: #{early_exit_mobilenet_forward.1} parent=0 // pred_check
    _
  $region7: #{early_exit_mobilenet_forward.1} parent=0 // pred_check_branch
    %12 = sbr.rel (0) target = $region9
  $region8: #{early_exit_mobilenet_forward.1} parent=0 // pred_region
    _
  $region9: #{early_exit_mobilenet_forward.1} parent=0 // pred_fallthru
    _
  // Predicated region
  $region10: #{early_exit_mobilenet_forward.1} parent=0 // pred_check
    _
  $region11: #{early_exit_mobilenet_forward.1} parent=0 // pred_check_branch
    %14 = sbr.rel (0) target = $region13
  $region12: #{early_exit_mobilenet_forward.1} parent=0 // pred_region
    _
  $region13: #{early_exit_mobilenet_forward.1} parent=0 // pred_fallthru
    _
  // Predicated region
  $region14: #{early_exit_mobilenet_forward.1} parent=0 // pred_check
    _
  $region15: #{early_exit_mobilenet_forward.1} parent=0 // pred_check_branch
    %16 = sbr.rel (0) target = $region17
  $region16: #{early_exit_mobilenet_forward.1} parent=0 // pred_region
    _
  $region17: #{early_exit_mobilenet_forward.1} parent=0 // pred_fallthru
    _
  %p18 = scmp.eq.s32.totalorder 0, 0
  // Predicated region
  $region18: #{early_exit_mobilenet_forward.1} parent=0 // pred_check
    %p19 = pneg %p18
  $region19: #{early_exit_mobilenet_forward.1} parent=0 // pred_check_branch
    %21 = sbr.rel (%p19) target = $region21
  $region20: #{early_exit_mobilenet_forward.1} parent=0 // pred_region
    %22 = vst [vmem:[%s4] sm:$0xff] 0.0
    %23 = vst [vmem:[%s4 + $0x8] sm:$0xff] 0.0
    %24 = vst [vmem:[%s4 + $0x10] sm:$0xff] 0.0
    %25 = vst [vmem:[%s4 + $0x18] sm:$0xff] 0.0
    %26 = vst [vmem:[%s4 + $0x20] sm:$0xff] 0.0
    %27 = vst [vmem:[%s4 + $0x28] sm:$0xff] 0.0
    %28 = vst [vmem:[%s4 + $0x30] sm:$0xff] 0.0
    %29 = vst [vmem:[%s4 + $0x38] sm:$0xff] 0.0
    %30 = vst [vmem:[%s4 + $0x40] sm:$0xff] 0.0
    %31 = vst [vmem:[%s4 + $0x48] sm:$0xff] 0.0
  $region21: #{early_exit_mobilenet_forward.1} parent=0 // pred_fallthru
    _
  %v32 = vld [vmem:[%s0] sm:$0xf]
  %v33 = vld [vmem:[%s0 + $0x4] sm:$0xf]
  %v34 = vld [vmem:[%s0 + $0x8] sm:$0xf]
  %v35 = vld [vmem:[%s0 + $0xc] sm:$0xf]
  %v36 = vld [vmem:[%s2] sm:$0xff]
  %v37 = vld [vmem:[%s2 + $0x8] sm:$0xff]
  %v38 = vld [vmem:[%s2 + $0x10] sm:$0xff]
  %v39 = vld [vmem:[%s2 + $0x18] sm:$0xff]
  %v40 = vld [vmem:[%s2 + $0x20] sm:$0xff]
  %v41 = vld [vmem:[%s2 + $0x28] sm:$0xff]
  %v42 = vld [vmem:[%s2 + $0x30] sm:$0xff]
  %v43 = vld [vmem:[%s2 + $0x38] sm:$0xff]
  %v44 = vld [vmem:[%s2 + $0x40] sm:$0xff]
  %v45 = vld [vmem:[%s2 + $0x48] sm:$0xff]
  %v46 = vld [vmem:[%s2 + $0x50] sm:$0xff]
  %v47 = vld [vmem:[%s2 + $0x58] sm:$0xff]
  %v48 = vld [vmem:[%s2 + $0x60] sm:$0xff]
  %v49 = vld [vmem:[%s2 + $0x68] sm:$0xff]
  %v50 = vld [vmem:[%s2 + $0x70] sm:$0xff]
  %v51 = vld [vmem:[%s2 + $0x78] sm:$0xff]
  %v52 = vld [vmem:[%s2 + $0x80] sm:$0xff]
  %v53 = vld [vmem:[%s2 + $0x88] sm:$0xff]
  %v54 = vld [vmem:[%s2 + $0x90] sm:$0xff]
  %v55 = vld [vmem:[%s2 + $0x98] sm:$0xff]
  %v56 = vld [vmem:[%s2 + $0xa0] sm:$0xff]
  %v57 = vld [vmem:[%s2 + $0xa8] sm:$0xff]
  %v58 = vld [vmem:[%s2 + $0xb0] sm:$0xff]
  %v59 = vld [vmem:[%s2 + $0xb8] sm:$0xff]
  %v60 = vld [vmem:[%s2 + $0xc0] sm:$0xff]
  %v61 = vld [vmem:[%s2 + $0xc8] sm:$0xff]
  %v62 = vld [vmem:[%s2 + $0xd0] sm:$0xff]
  %v63 = vld [vmem:[%s2 + $0xd8] sm:$0xff]
  %v64 = vld [vmem:[%s2 + $0xe0] sm:$0xff]
  %v65 = vld [vmem:[%s2 + $0xe8] sm:$0xff]
  %v66 = vld [vmem:[%s2 + $0xf0] sm:$0xff]
  %v67 = vld [vmem:[%s2 + $0xf8] sm:$0xff]
  %v68 = vld [vmem:[%s2 + $0x100] sm:$0xff]
  %v69 = vld [vmem:[%s2 + $0x108] sm:$0xff]
  %v70 = vld [vmem:[%s2 + $0x110] sm:$0xff]
  %v71 = vld [vmem:[%s2 + $0x118] sm:$0xff]
  %v72 = vld [vmem:[%s2 + $0x120] sm:$0xff]
  %v73 = vld [vmem:[%s2 + $0x128] sm:$0xff]
  %v74 = vld [vmem:[%s2 + $0x130] sm:$0xff]
  %v75 = vld [vmem:[%s2 + $0x138] sm:$0xff]
  %v76 = vld [vmem:[%s2 + $0x140] sm:$0xff]
  %v77 = vld [vmem:[%s2 + $0x148] sm:$0xff]
  %v78 = vld [vmem:[%s2 + $0x150] sm:$0xff]
  %v79 = vld [vmem:[%s2 + $0x158] sm:$0xff]
  %v80 = vld [vmem:[%s2 + $0x160] sm:$0xff]
  %v81 = vld [vmem:[%s2 + $0x168] sm:$0xff]
  %v82 = vld [vmem:[%s2 + $0x170] sm:$0xff]
  %v83 = vld [vmem:[%s2 + $0x178] sm:$0xff]
  %v84 = vld [vmem:[%s2 + $0x180] sm:$0xff]
  %v85 = vld [vmem:[%s2 + $0x188] sm:$0xff]
  %v86 = vld [vmem:[%s2 + $0x190] sm:$0xff]
  %v87 = vld [vmem:[%s2 + $0x198] sm:$0xff]
  %v88 = vld [vmem:[%s2 + $0x1a0] sm:$0xff]
  %v89 = vld [vmem:[%s2 + $0x1a8] sm:$0xff]
  %v90 = vld [vmem:[%s2 + $0x1b0] sm:$0xff]
  %v91 = vld [vmem:[%s2 + $0x1b8] sm:$0xff]
  %v92 = vld [vmem:[%s2 + $0x1c0] sm:$0xff]
  %v93 = vld [vmem:[%s2 + $0x1c8] sm:$0xff]
  %v94 = vld [vmem:[%s2 + $0x1d0] sm:$0xff]
  %v95 = vld [vmem:[%s2 + $0x1d8] sm:$0xff]
  %v96 = vld [vmem:[%s2 + $0x1e0] sm:$0xff]
  %v97 = vld [vmem:[%s2 + $0x1e8] sm:$0xff]
  %v98 = vld [vmem:[%s2 + $0x1f0] sm:$0xff]
  %v99 = vld [vmem:[%s2 + $0x1f8] sm:$0xff]
  %v100 = vld [vmem:[%s2 + $0x200] sm:$0xff]
  %v101 = vld [vmem:[%s2 + $0x208] sm:$0xff]
  %v102 = vld [vmem:[%s2 + $0x210] sm:$0xff]
  %v103 = vld [vmem:[%s2 + $0x218] sm:$0xff]
  %v104 = vld [vmem:[%s2 + $0x220] sm:$0xff]
  %v105 = vld [vmem:[%s2 + $0x228] sm:$0xff]
  %v106 = vld [vmem:[%s2 + $0x230] sm:$0xff]
  %v107 = vld [vmem:[%s2 + $0x238] sm:$0xff]
  %v108 = vld [vmem:[%s2 + $0x240] sm:$0xff]
  %v109 = vld [vmem:[%s2 + $0x248] sm:$0xff]
  %v110 = vld [vmem:[%s2 + $0x250] sm:$0xff]
  %v111 = vld [vmem:[%s2 + $0x258] sm:$0xff]
  %v112 = vld [vmem:[%s2 + $0x260] sm:$0xff]
  %v113 = vld [vmem:[%s2 + $0x268] sm:$0xff]
  %v114 = vld [vmem:[%s2 + $0x270] sm:$0xff]
  %v115 = vld [vmem:[%s2 + $0x278] sm:$0xff]
  %v116 = vld [vmem:[%s3] sm:$0xff]
  %v117 = vld [vmem:[%s3 + $0x8] sm:$0x3]
  %v120 = vperm.slane %v116, 0
  %v121 = vperm.slane %v116, 1
  %v122 = vperm.slane %v116, 2
  %v123 = vperm.slane %v116, 3
  %v124 = vperm.slane %v116, 4
  %v125 = vperm.slane %v116, 5
  %v126 = vperm.slane %v116, 6
  %v127 = vperm.slane %v116, 7
  %v128 = vperm.slane %v117, 0
  %v129 = vperm.slane %v117, 1
  %v144 = vunpack.c.l.b16 %v32
  %v145 = vunpack.c.l.b16 %v33
  %v146 = vunpack.c.l.b16 %v34
  %v147 = vunpack.c.l.b16 %v35
  %v148 = vpack.c.b16 %v145, %v144
  %v149 = vpack.c.b16 %v147, %v146
  %v232 = vunpack.c.l.b16 %v36
  %v233 = vunpack.c.h.b16 %v36
  %v234 = vunpack.c.l.b16 %v37
  %v235 = vunpack.c.h.b16 %v37
  %v236 = vunpack.c.l.b16 %v38
  %v237 = vunpack.c.h.b16 %v38
  %v238 = vunpack.c.l.b16 %v39
  %v239 = vunpack.c.h.b16 %v39
  %v240 = vunpack.c.l.b16 %v40
  %v241 = vunpack.c.h.b16 %v40
  %v242 = vunpack.c.l.b16 %v41
  %v243 = vunpack.c.h.b16 %v41
  %v244 = vunpack.c.l.b16 %v42
  %v245 = vunpack.c.h.b16 %v42
  %v246 = vunpack.c.l.b16 %v43
  %v247 = vunpack.c.h.b16 %v43
  %v248 = vunpack.c.l.b16 %v44
  %v249 = vunpack.c.h.b16 %v44
  %v250 = vunpack.c.l.b16 %v45
  %v251 = vunpack.c.h.b16 %v45
  %v252 = vunpack.c.l.b16 %v46
  %v253 = vunpack.c.h.b16 %v46
  %v254 = vunpack.c.l.b16 %v47
  %v255 = vunpack.c.h.b16 %v47
  %v256 = vunpack.c.l.b16 %v48
  %v257 = vunpack.c.h.b16 %v48
  %v258 = vunpack.c.l.b16 %v49
  %v259 = vunpack.c.h.b16 %v49
  %v260 = vunpack.c.l.b16 %v50
  %v261 = vunpack.c.h.b16 %v50
  %v262 = vunpack.c.l.b16 %v51
  %v263 = vunpack.c.h.b16 %v51
  %v264 = vunpack.c.l.b16 %v52
  %v265 = vunpack.c.h.b16 %v52
  %v266 = vunpack.c.l.b16 %v53
  %v267 = vunpack.c.h.b16 %v53
  %v268 = vunpack.c.l.b16 %v54
  %v269 = vunpack.c.h.b16 %v54
  %v270 = vunpack.c.l.b16 %v55
  %v271 = vunpack.c.h.b16 %v55
  %v272 = vunpack.c.l.b16 %v56
  %v273 = vunpack.c.h.b16 %v56
  %v274 = vunpack.c.l.b16 %v57
  %v275 = vunpack.c.h.b16 %v57
  %v276 = vunpack.c.l.b16 %v58
  %v277 = vunpack.c.h.b16 %v58
  %v278 = vunpack.c.l.b16 %v59
  %v279 = vunpack.c.h.b16 %v59
  %v280 = vunpack.c.l.b16 %v60
  %v281 = vunpack.c.h.b16 %v60
  %v282 = vunpack.c.l.b16 %v61
  %v283 = vunpack.c.h.b16 %v61
  %v284 = vunpack.c.l.b16 %v62
  %v285 = vunpack.c.h.b16 %v62
  %v286 = vunpack.c.l.b16 %v63
  %v287 = vunpack.c.h.b16 %v63
  %v288 = vunpack.c.l.b16 %v64
  %v289 = vunpack.c.h.b16 %v64
  %v290 = vunpack.c.l.b16 %v65
  %v291 = vunpack.c.h.b16 %v65
  %v292 = vunpack.c.l.b16 %v66
  %v293 = vunpack.c.h.b16 %v66
  %v294 = vunpack.c.l.b16 %v67
  %v295 = vunpack.c.h.b16 %v67
  %v296 = vunpack.c.l.b16 %v68
  %v297 = vunpack.c.h.b16 %v68
  %v298 = vunpack.c.l.b16 %v69
  %v299 = vunpack.c.h.b16 %v69
  %v300 = vunpack.c.l.b16 %v70
  %v301 = vunpack.c.h.b16 %v70
  %v302 = vunpack.c.l.b16 %v71
  %v303 = vunpack.c.h.b16 %v71
  %v304 = vunpack.c.l.b16 %v72
  %v305 = vunpack.c.h.b16 %v72
  %v306 = vunpack.c.l.b16 %v73
  %v307 = vunpack.c.h.b16 %v73
  %v308 = vunpack.c.l.b16 %v74
  %v309 = vunpack.c.h.b16 %v74
  %v310 = vunpack.c.l.b16 %v75
  %v311 = vunpack.c.h.b16 %v75
  %v312 = vunpack.c.l.b16 %v76
  %v313 = vunpack.c.h.b16 %v76
  %v314 = vunpack.c.l.b16 %v77
  %v315 = vunpack.c.h.b16 %v77
  %v316 = vunpack.c.l.b16 %v78
  %v317 = vunpack.c.h.b16 %v78
  %v318 = vunpack.c.l.b16 %v79
  %v319 = vunpack.c.h.b16 %v79
  %v320 = vunpack.c.l.b16 %v80
  %v321 = vunpack.c.h.b16 %v80
  %v322 = vunpack.c.l.b16 %v81
  %v323 = vunpack.c.h.b16 %v81
  %v324 = vunpack.c.l.b16 %v82
  %v325 = vunpack.c.h.b16 %v82
  %v326 = vunpack.c.l.b16 %v83
  %v327 = vunpack.c.h.b16 %v83
  %v328 = vunpack.c.l.b16 %v84
  %v329 = vunpack.c.h.b16 %v84
  %v330 = vunpack.c.l.b16 %v85
  %v331 = vunpack.c.h.b16 %v85
  %v332 = vunpack.c.l.b16 %v86
  %v333 = vunpack.c.h.b16 %v86
  %v334 = vunpack.c.l.b16 %v87
  %v335 = vunpack.c.h.b16 %v87
  %v336 = vunpack.c.l.b16 %v88
  %v337 = vunpack.c.h.b16 %v88
  %v338 = vunpack.c.l.b16 %v89
  %v339 = vunpack.c.h.b16 %v89
  %v340 = vunpack.c.l.b16 %v90
  %v341 = vunpack.c.h.b16 %v90
  %v342 = vunpack.c.l.b16 %v91
  %v343 = vunpack.c.h.b16 %v91
  %v344 = vunpack.c.l.b16 %v92
  %v345 = vunpack.c.h.b16 %v92
  %v346 = vunpack.c.l.b16 %v93
  %v347 = vunpack.c.h.b16 %v93
  %v348 = vunpack.c.l.b16 %v94
  %v349 = vunpack.c.h.b16 %v94
  %v350 = vunpack.c.l.b16 %v95
  %v351 = vunpack.c.h.b16 %v95
  %v352 = vunpack.c.l.b16 %v96
  %v353 = vunpack.c.h.b16 %v96
  %v354 = vunpack.c.l.b16 %v97
  %v355 = vunpack.c.h.b16 %v97
  %v356 = vunpack.c.l.b16 %v98
  %v357 = vunpack.c.h.b16 %v98
  %v358 = vunpack.c.l.b16 %v99
  %v359 = vunpack.c.h.b16 %v99
  %v360 = vunpack.c.l.b16 %v100
  %v361 = vunpack.c.h.b16 %v100
  %v362 = vunpack.c.l.b16 %v101
  %v363 = vunpack.c.h.b16 %v101
  %v364 = vunpack.c.l.b16 %v102
  %v365 = vunpack.c.h.b16 %v102
  %v366 = vunpack.c.l.b16 %v103
  %v367 = vunpack.c.h.b16 %v103
  %v368 = vunpack.c.l.b16 %v104
  %v369 = vunpack.c.h.b16 %v104
  %v370 = vunpack.c.l.b16 %v105
  %v371 = vunpack.c.h.b16 %v105
  %v372 = vunpack.c.l.b16 %v106
  %v373 = vunpack.c.h.b16 %v106
  %v374 = vunpack.c.l.b16 %v107
  %v375 = vunpack.c.h.b16 %v107
  %v376 = vunpack.c.l.b16 %v108
  %v377 = vunpack.c.h.b16 %v108
  %v378 = vunpack.c.l.b16 %v109
  %v379 = vunpack.c.h.b16 %v109
  %v380 = vunpack.c.l.b16 %v110
  %v381 = vunpack.c.h.b16 %v110
  %v382 = vunpack.c.l.b16 %v111
  %v383 = vunpack.c.h.b16 %v111
  %v384 = vunpack.c.l.b16 %v112
  %v385 = vunpack.c.h.b16 %v112
  %v386 = vunpack.c.l.b16 %v113
  %v387 = vunpack.c.h.b16 %v113
  %v388 = vunpack.c.l.b16 %v114
  %v389 = vunpack.c.h.b16 %v114
  %v390 = vunpack.c.l.b16 %v115
  %v391 = vunpack.c.h.b16 %v115
  %v392 = vpack.c.b16 %v242, %v232
  %v393 = vpack.c.b16 %v243, %v233
  %v394 = vpack.c.b16 %v244, %v234
  %v395 = vpack.c.b16 %v245, %v235
  %v396 = vpack.c.b16 %v246, %v236
  %v397 = vpack.c.b16 %v247, %v237
  %v398 = vpack.c.b16 %v248, %v238
  %v399 = vpack.c.b16 %v249, %v239
  %v400 = vpack.c.b16 %v250, %v240
  %v401 = vpack.c.b16 %v251, %v241
  %v402 = vpack.c.b16 %v262, %v252
  %v403 = vpack.c.b16 %v263, %v253
  %v404 = vpack.c.b16 %v264, %v254
  %v405 = vpack.c.b16 %v265, %v255
  %v406 = vpack.c.b16 %v266, %v256
  %v407 = vpack.c.b16 %v267, %v257
  %v408 = vpack.c.b16 %v268, %v258
  %v409 = vpack.c.b16 %v269, %v259
  %v410 = vpack.c.b16 %v270, %v260
  %v411 = vpack.c.b16 %v271, %v261
  %v412 = vpack.c.b16 %v282, %v272
  %v413 = vpack.c.b16 %v283, %v273
  %v414 = vpack.c.b16 %v284, %v274
  %v415 = vpack.c.b16 %v285, %v275
  %v416 = vpack.c.b16 %v286, %v276
  %v417 = vpack.c.b16 %v287, %v277
  %v418 = vpack.c.b16 %v288, %v278
  %v419 = vpack.c.b16 %v289, %v279
  %v420 = vpack.c.b16 %v290, %v280
  %v421 = vpack.c.b16 %v291, %v281
  %v422 = vpack.c.b16 %v302, %v292
  %v423 = vpack.c.b16 %v303, %v293
  %v424 = vpack.c.b16 %v304, %v294
  %v425 = vpack.c.b16 %v305, %v295
  %v426 = vpack.c.b16 %v306, %v296
  %v427 = vpack.c.b16 %v307, %v297
  %v428 = vpack.c.b16 %v308, %v298
  %v429 = vpack.c.b16 %v309, %v299
  %v430 = vpack.c.b16 %v310, %v300
  %v431 = vpack.c.b16 %v311, %v301
  %v432 = vpack.c.b16 %v322, %v312
  %v433 = vpack.c.b16 %v323, %v313
  %v434 = vpack.c.b16 %v324, %v314
  %v435 = vpack.c.b16 %v325, %v315
  %v436 = vpack.c.b16 %v326, %v316
  %v437 = vpack.c.b16 %v327, %v317
  %v438 = vpack.c.b16 %v328, %v318
  %v439 = vpack.c.b16 %v329, %v319
  %v440 = vpack.c.b16 %v330, %v320
  %v441 = vpack.c.b16 %v331, %v321
  %v442 = vpack.c.b16 %v342, %v332
  %v443 = vpack.c.b16 %v343, %v333
  %v444 = vpack.c.b16 %v344, %v334
  %v445 = vpack.c.b16 %v345, %v335
  %v446 = vpack.c.b16 %v346, %v336
  %v447 = vpack.c.b16 %v347, %v337
  %v448 = vpack.c.b16 %v348, %v338
  %v449 = vpack.c.b16 %v349, %v339
  %v450 = vpack.c.b16 %v350, %v340
  %v451 = vpack.c.b16 %v351, %v341
  %v452 = vpack.c.b16 %v362, %v352
  %v453 = vpack.c.b16 %v363, %v353
  %v454 = vpack.c.b16 %v364, %v354
  %v455 = vpack.c.b16 %v365, %v355
  %v456 = vpack.c.b16 %v366, %v356
  %v457 = vpack.c.b16 %v367, %v357
  %v458 = vpack.c.b16 %v368, %v358
  %v459 = vpack.c.b16 %v369, %v359
  %v460 = vpack.c.b16 %v370, %v360
  %v461 = vpack.c.b16 %v371, %v361
  %v462 = vpack.c.b16 %v382, %v372
  %v463 = vpack.c.b16 %v383, %v373
  %v464 = vpack.c.b16 %v384, %v374
  %v465 = vpack.c.b16 %v385, %v375
  %v466 = vpack.c.b16 %v386, %v376
  %v467 = vpack.c.b16 %v387, %v377
  %v468 = vpack.c.b16 %v388, %v378
  %v469 = vpack.c.b16 %v389, %v379
  %v470 = vpack.c.b16 %v390, %v380
  %v471 = vpack.c.b16 %v391, %v381
  %552 = vmatpush.bf16.msra.mxu0 %v462
  %553 = vmatpush.bf16.msra.mxu0 %v452
  %554 = vmatpush.bf16.msra.mxu0 %v442
  %555 = vmatpush.bf16.msra.mxu0 %v432
  %556 = vmatpush.bf16.msra.mxu0 %v422
  %557 = vmatpush.bf16.msra.mxu0 %v412
  %558 = vmatpush.bf16.msra.mxu0 %v402
  %559 = vmatpush.bf16.msra.mxu0 %v392
  %560 = vmatmul.bf16.gmra.mxu0 %v148
  %v561 = vpop.f32.mrf.mxu0
  %v562 = vadd.f32 %v120, %v561
  %v563 = vpop.f32.mrf.mxu0
  %v564 = vadd.f32 %v120, %v563
  %565 = vmatmul.bf16.gmra.mxu0 %v149
  %v566 = vpop.f32.mrf.mxu0
  %v567 = vadd.f32 %v120, %v566
  %v568 = vpop.f32.mrf.mxu0
  %v569 = vadd.f32 %v120, %v568
  %570 = vdwg.mxu0
  %571 = vmatpush.bf16.msra.mxu0 %v463
  %572 = vmatpush.bf16.msra.mxu0 %v453
  %573 = vmatpush.bf16.msra.mxu0 %v443
  %574 = vmatpush.bf16.msra.mxu0 %v433
  %575 = vmatpush.bf16.msra.mxu0 %v423
  %576 = vmatpush.bf16.msra.mxu0 %v413
  %577 = vmatpush.bf16.msra.mxu0 %v403
  %578 = vmatpush.bf16.msra.mxu0 %v393
  %579 = vmatmul.bf16.gmra.mxu0 %v148
  %v580 = vpop.f32.mrf.mxu0
  %v581 = vadd.f32 %v121, %v580
  %v582 = vpop.f32.mrf.mxu0
  %v583 = vadd.f32 %v121, %v582
  %584 = vmatmul.bf16.gmra.mxu0 %v149
  %v585 = vpop.f32.mrf.mxu0
  %v586 = vadd.f32 %v121, %v585
  %v587 = vpop.f32.mrf.mxu0
  %v588 = vadd.f32 %v121, %v587
  %589 = vdwg.mxu0
  %590 = vmatpush.bf16.msra.mxu0 %v464
  %591 = vmatpush.bf16.msra.mxu0 %v454
  %592 = vmatpush.bf16.msra.mxu0 %v444
  %593 = vmatpush.bf16.msra.mxu0 %v434
  %594 = vmatpush.bf16.msra.mxu0 %v424
  %595 = vmatpush.bf16.msra.mxu0 %v414
  %596 = vmatpush.bf16.msra.mxu0 %v404
  %597 = vmatpush.bf16.msra.mxu0 %v394
  %598 = vmatmul.bf16.gmra.mxu0 %v148
  %v599 = vpop.f32.mrf.mxu0
  %v600 = vadd.f32 %v122, %v599
  %v601 = vpop.f32.mrf.mxu0
  %v602 = vadd.f32 %v122, %v601
  %603 = vmatmul.bf16.gmra.mxu0 %v149
  %v604 = vpop.f32.mrf.mxu0
  %v605 = vadd.f32 %v122, %v604
  %v606 = vpop.f32.mrf.mxu0
  %v607 = vadd.f32 %v122, %v606
  %608 = vdwg.mxu0
  %609 = vmatpush.bf16.msra.mxu0 %v465
  %610 = vmatpush.bf16.msra.mxu0 %v455
  %611 = vmatpush.bf16.msra.mxu0 %v445
  %612 = vmatpush.bf16.msra.mxu0 %v435
  %613 = vmatpush.bf16.msra.mxu0 %v425
  %614 = vmatpush.bf16.msra.mxu0 %v415
  %615 = vmatpush.bf16.msra.mxu0 %v405
  %616 = vmatpush.bf16.msra.mxu0 %v395
  %617 = vmatmul.bf16.gmra.mxu0 %v148
  %v618 = vpop.f32.mrf.mxu0
  %v619 = vadd.f32 %v123, %v618
  %v620 = vpop.f32.mrf.mxu0
  %v621 = vadd.f32 %v123, %v620
  %622 = vmatmul.bf16.gmra.mxu0 %v149
  %v623 = vpop.f32.mrf.mxu0
  %v624 = vadd.f32 %v123, %v623
  %v625 = vpop.f32.mrf.mxu0
  %v626 = vadd.f32 %v123, %v625
  %627 = vdwg.mxu0
  %628 = vmatpush.bf16.msra.mxu0 %v466
  %629 = vmatpush.bf16.msra.mxu0 %v456
  %630 = vmatpush.bf16.msra.mxu0 %v446
  %631 = vmatpush.bf16.msra.mxu0 %v436
  %632 = vmatpush.bf16.msra.mxu0 %v426
  %633 = vmatpush.bf16.msra.mxu0 %v416
  %634 = vmatpush.bf16.msra.mxu0 %v406
  %635 = vmatpush.bf16.msra.mxu0 %v396
  %636 = vmatmul.bf16.gmra.mxu0 %v148
  %v637 = vpop.f32.mrf.mxu0
  %v638 = vadd.f32 %v124, %v637
  %v639 = vpop.f32.mrf.mxu0
  %v640 = vadd.f32 %v124, %v639
  %641 = vmatmul.bf16.gmra.mxu0 %v149
  %v642 = vpop.f32.mrf.mxu0
  %v643 = vadd.f32 %v124, %v642
  %v644 = vpop.f32.mrf.mxu0
  %v645 = vadd.f32 %v124, %v644
  %646 = vdwg.mxu0
  %647 = vmatpush.bf16.msra.mxu0 %v467
  %648 = vmatpush.bf16.msra.mxu0 %v457
  %649 = vmatpush.bf16.msra.mxu0 %v447
  %650 = vmatpush.bf16.msra.mxu0 %v437
  %651 = vmatpush.bf16.msra.mxu0 %v427
  %652 = vmatpush.bf16.msra.mxu0 %v417
  %653 = vmatpush.bf16.msra.mxu0 %v407
  %654 = vmatpush.bf16.msra.mxu0 %v397
  %655 = vmatmul.bf16.gmra.mxu0 %v148
  %v656 = vpop.f32.mrf.mxu0
  %v657 = vadd.f32 %v125, %v656
  %v658 = vpop.f32.mrf.mxu0
  %v659 = vadd.f32 %v125, %v658
  %660 = vmatmul.bf16.gmra.mxu0 %v149
  %v661 = vpop.f32.mrf.mxu0
  %v662 = vadd.f32 %v125, %v661
  %v663 = vpop.f32.mrf.mxu0
  %v664 = vadd.f32 %v125, %v663
  %665 = vdwg.mxu0
  %666 = vmatpush.bf16.msra.mxu0 %v468
  %667 = vmatpush.bf16.msra.mxu0 %v458
  %668 = vmatpush.bf16.msra.mxu0 %v448
  %669 = vmatpush.bf16.msra.mxu0 %v438
  %670 = vmatpush.bf16.msra.mxu0 %v428
  %671 = vmatpush.bf16.msra.mxu0 %v418
  %672 = vmatpush.bf16.msra.mxu0 %v408
  %673 = vmatpush.bf16.msra.mxu0 %v398
  %674 = vmatmul.bf16.gmra.mxu0 %v148
  %v675 = vpop.f32.mrf.mxu0
  %v676 = vadd.f32 %v126, %v675
  %v677 = vpop.f32.mrf.mxu0
  %v678 = vadd.f32 %v126, %v677
  %679 = vmatmul.bf16.gmra.mxu0 %v149
  %v680 = vpop.f32.mrf.mxu0
  %v681 = vadd.f32 %v126, %v680
  %v682 = vpop.f32.mrf.mxu0
  %v683 = vadd.f32 %v126, %v682
  %684 = vdwg.mxu0
  %685 = vmatpush.bf16.msra.mxu0 %v469
  %686 = vmatpush.bf16.msra.mxu0 %v459
  %687 = vmatpush.bf16.msra.mxu0 %v449
  %688 = vmatpush.bf16.msra.mxu0 %v439
  %689 = vmatpush.bf16.msra.mxu0 %v429
  %690 = vmatpush.bf16.msra.mxu0 %v419
  %691 = vmatpush.bf16.msra.mxu0 %v409
  %692 = vmatpush.bf16.msra.mxu0 %v399
  %693 = vmatmul.bf16.gmra.mxu0 %v148
  %v694 = vpop.f32.mrf.mxu0
  %v695 = vadd.f32 %v127, %v694
  %v696 = vpop.f32.mrf.mxu0
  %v697 = vadd.f32 %v127, %v696
  %698 = vmatmul.bf16.gmra.mxu0 %v149
  %v699 = vpop.f32.mrf.mxu0
  %v700 = vadd.f32 %v127, %v699
  %v701 = vpop.f32.mrf.mxu0
  %v702 = vadd.f32 %v127, %v701
  %703 = vdwg.mxu0
  %704 = vmatpush.bf16.msra.mxu0 %v470
  %705 = vmatpush.bf16.msra.mxu0 %v460
  %706 = vmatpush.bf16.msra.mxu0 %v450
  %707 = vmatpush.bf16.msra.mxu0 %v440
  %708 = vmatpush.bf16.msra.mxu0 %v430
  %709 = vmatpush.bf16.msra.mxu0 %v420
  %710 = vmatpush.bf16.msra.mxu0 %v410
  %711 = vmatpush.bf16.msra.mxu0 %v400
  %712 = vmatmul.bf16.gmra.mxu0 %v148
  %v713 = vpop.f32.mrf.mxu0
  %v714 = vadd.f32 %v128, %v713
  %v715 = vpop.f32.mrf.mxu0
  %v716 = vadd.f32 %v128, %v715
  %717 = vmatmul.bf16.gmra.mxu0 %v149
  %v718 = vpop.f32.mrf.mxu0
  %v719 = vadd.f32 %v128, %v718
  %v720 = vpop.f32.mrf.mxu0
  %v721 = vadd.f32 %v128, %v720
  %722 = vdwg.mxu0
  %723 = vmatpush.bf16.msra.mxu0 %v471
  %724 = vmatpush.bf16.msra.mxu0 %v461
  %725 = vmatpush.bf16.msra.mxu0 %v451
  %726 = vmatpush.bf16.msra.mxu0 %v441
  %727 = vmatpush.bf16.msra.mxu0 %v431
  %728 = vmatpush.bf16.msra.mxu0 %v421
  %729 = vmatpush.bf16.msra.mxu0 %v411
  %730 = vmatpush.bf16.msra.mxu0 %v401
  %731 = vmatmul.bf16.gmra.mxu0 %v148
  %v732 = vpop.f32.mrf.mxu0
  %v733 = vadd.f32 %v129, %v732
  %v734 = vpop.f32.mrf.mxu0
  %v735 = vadd.f32 %v129, %v734
  %736 = vmatmul.bf16.gmra.mxu0 %v149
  %v737 = vpop.f32.mrf.mxu0
  %v738 = vadd.f32 %v129, %v737
  %v739 = vpop.f32.mrf.mxu0
  %v740 = vadd.f32 %v129, %v739
  %741 = vdwg.mxu0
  %v742 = vmax.f32 %v562, 0.0
  %v743 = vmax.f32 %v581, 0.0
  %v744 = vmax.f32 %v600, 0.0
  %v745 = vmax.f32 %v619, 0.0
  %v746 = vmax.f32 %v638, 0.0
  %v747 = vmax.f32 %v657, 0.0
  %v748 = vmax.f32 %v676, 0.0
  %v749 = vmax.f32 %v695, 0.0
  %v750 = vmax.f32 %v714, 0.0
  %v751 = vmax.f32 %v733, 0.0
  %v752 = vmax.f32 %v564, 0.0
  %v753 = vmax.f32 %v583, 0.0
  %v754 = vmax.f32 %v602, 0.0
  %v755 = vmax.f32 %v621, 0.0
  %v756 = vmax.f32 %v640, 0.0
  %v757 = vmax.f32 %v659, 0.0
  %v758 = vmax.f32 %v678, 0.0
  %v759 = vmax.f32 %v697, 0.0
  %v760 = vmax.f32 %v716, 0.0
  %v761 = vmax.f32 %v735, 0.0
  %v762 = vmax.f32 %v567, 0.0
  %v763 = vmax.f32 %v586, 0.0
  %v764 = vmax.f32 %v605, 0.0
  %v765 = vmax.f32 %v624, 0.0
  %v766 = vmax.f32 %v643, 0.0
  %v767 = vmax.f32 %v662, 0.0
  %v768 = vmax.f32 %v681, 0.0
  %v769 = vmax.f32 %v700, 0.0
  %v770 = vmax.f32 %v719, 0.0
  %v771 = vmax.f32 %v738, 0.0
  %v772 = vmax.f32 %v569, 0.0
  %v773 = vmax.f32 %v588, 0.0
  %v774 = vmax.f32 %v607, 0.0
  %v775 = vmax.f32 %v626, 0.0
  %v776 = vmax.f32 %v645, 0.0
  %v777 = vmax.f32 %v664, 0.0
  %v778 = vmax.f32 %v683, 0.0
  %v779 = vmax.f32 %v702, 0.0
  %v780 = vmax.f32 %v721, 0.0
  %v781 = vmax.f32 %v740, 0.0
  %v782 = vmin.f32 %v742, 6.0
  %v783 = vmin.f32 %v743, 6.0
  %v784 = vmin.f32 %v744, 6.0
  %v785 = vmin.f32 %v745, 6.0
  %v786 = vmin.f32 %v746, 6.0
  %v787 = vmin.f32 %v747, 6.0
  %v788 = vmin.f32 %v748, 6.0
  %v789 = vmin.f32 %v749, 6.0
  %v790 = vmin.f32 %v750, 6.0
  %v791 = vmin.f32 %v751, 6.0
  %v792 = vmin.f32 %v752, 6.0
  %v793 = vmin.f32 %v753, 6.0
  %v794 = vmin.f32 %v754, 6.0
  %v795 = vmin.f32 %v755, 6.0
  %v796 = vmin.f32 %v756, 6.0
  %v797 = vmin.f32 %v757, 6.0
  %v798 = vmin.f32 %v758, 6.0
  %v799 = vmin.f32 %v759, 6.0
  %v800 = vmin.f32 %v760, 6.0
  %v801 = vmin.f32 %v761, 6.0
  %v802 = vmin.f32 %v762, 6.0
  %v803 = vmin.f32 %v763, 6.0
  %v804 = vmin.f32 %v764, 6.0
  %v805 = vmin.f32 %v765, 6.0
  %v806 = vmin.f32 %v766, 6.0
  %v807 = vmin.f32 %v767, 6.0
  %v808 = vmin.f32 %v768, 6.0
  %v809 = vmin.f32 %v769, 6.0
  %v810 = vmin.f32 %v770, 6.0
  %v811 = vmin.f32 %v771, 6.0
  %v812 = vmin.f32 %v772, 6.0
  %v813 = vmin.f32 %v773, 6.0
  %v814 = vmin.f32 %v774, 6.0
  %v815 = vmin.f32 %v775, 6.0
  %v816 = vmin.f32 %v776, 6.0
  %v817 = vmin.f32 %v777, 6.0
  %v818 = vmin.f32 %v778, 6.0
  %v819 = vmin.f32 %v779, 6.0
  %v820 = vmin.f32 %v780, 6.0
  %v821 = vmin.f32 %v781, 6.0
  %v822 = vld [vmem:[%s4] sm:$0xff]
  %v823 = vld [vmem:[%s4 + $0x8] sm:$0xff]
  %v824 = vld [vmem:[%s4 + $0x10] sm:$0xff]
  %v825 = vld [vmem:[%s4 + $0x18] sm:$0xff]
  %v826 = vld [vmem:[%s4 + $0x20] sm:$0xff]
  %v827 = vld [vmem:[%s4 + $0x28] sm:$0xff]
  %v828 = vld [vmem:[%s4 + $0x30] sm:$0xff]
  %v829 = vld [vmem:[%s4 + $0x38] sm:$0xff]
  %v830 = vld [vmem:[%s4 + $0x40] sm:$0xff]
  %v831 = vld [vmem:[%s4 + $0x48] sm:$0xff]
  %v832 = vld [vmem:[%s1] sm:$0xf]
  %v833 = vpack.c.bf16 %v792, %v782
  %v834 = vpack.c.bf16 %v793, %v783
  %v835 = vpack.c.bf16 %v794, %v784
  %v836 = vpack.c.bf16 %v795, %v785
  %v837 = vpack.c.bf16 %v796, %v786
  %v838 = vpack.c.bf16 %v797, %v787
  %v839 = vpack.c.bf16 %v798, %v788
  %v840 = vpack.c.bf16 %v799, %v789
  %v841 = vpack.c.bf16 %v800, %v790
  %v842 = vpack.c.bf16 %v801, %v791
  %v843 = vpack.c.bf16 %v812, %v802
  %v844 = vpack.c.bf16 %v813, %v803
  %v845 = vpack.c.bf16 %v814, %v804
  %v846 = vpack.c.bf16 %v815, %v805
  %v847 = vpack.c.bf16 %v816, %v806
  %v848 = vpack.c.bf16 %v817, %v807
  %v849 = vpack.c.bf16 %v818, %v808
  %v850 = vpack.c.bf16 %v819, %v809
  %v851 = vpack.c.bf16 %v820, %v810
  %v852 = vpack.c.bf16 %v821, %v811
  %vm853 = vcmask 261120
  %v855 = vsel %vm853, %v832, 0
  %857 = vmatpush.bf16.msra.mxu0 0
  %858 = vmatpush.bf16.msra.mxu0 0
  %859 = vmatpush.bf16.msra.mxu0 0
  %860 = vmatpush.bf16.msra.mxu0 0
  %861 = vmatpush.bf16.msra.mxu0 0
  %862 = vmatpush.bf16.msra.mxu0 0
  %863 = vmatpush.bf16.msra.mxu0 %v843
  %864 = vmatpush.bf16.msra.mxu0 %v833
  %865 = vmatmul.bf16.gmra.mxu0 %v855
  %v866 = vpop.f32.mrf.mxu0
  %v867 = vadd.f32 0.0, %v866
  %v868 = vpop.f32.mrf.mxu0
  %869 = vdwg.mxu0
  %870 = vmatpush.bf16.msra.mxu0 0
  %871 = vmatpush.bf16.msra.mxu0 0
  %872 = vmatpush.bf16.msra.mxu0 0
  %873 = vmatpush.bf16.msra.mxu0 0
  %874 = vmatpush.bf16.msra.mxu0 0
  %875 = vmatpush.bf16.msra.mxu0 0
  %876 = vmatpush.bf16.msra.mxu0 %v844
  %877 = vmatpush.bf16.msra.mxu0 %v834
  %878 = vmatmul.bf16.gmra.mxu0 %v855
  %v879 = vpop.f32.mrf.mxu0
  %v880 = vadd.f32 0.0, %v879
  %v881 = vpop.f32.mrf.mxu0
  %882 = vdwg.mxu0
  %883 = vmatpush.bf16.msra.mxu0 0
  %884 = vmatpush.bf16.msra.mxu0 0
  %885 = vmatpush.bf16.msra.mxu0 0
  %886 = vmatpush.bf16.msra.mxu0 0
  %887 = vmatpush.bf16.msra.mxu0 0
  %888 = vmatpush.bf16.msra.mxu0 0
  %889 = vmatpush.bf16.msra.mxu0 %v845
  %890 = vmatpush.bf16.msra.mxu0 %v835
  %891 = vmatmul.bf16.gmra.mxu0 %v855
  %v892 = vpop.f32.mrf.mxu0
  %v893 = vadd.f32 0.0, %v892
  %v894 = vpop.f32.mrf.mxu0
  %895 = vdwg.mxu0
  %896 = vmatpush.bf16.msra.mxu0 0
  %897 = vmatpush.bf16.msra.mxu0 0
  %898 = vmatpush.bf16.msra.mxu0 0
  %899 = vmatpush.bf16.msra.mxu0 0
  %900 = vmatpush.bf16.msra.mxu0 0
  %901 = vmatpush.bf16.msra.mxu0 0
  %902 = vmatpush.bf16.msra.mxu0 %v846
  %903 = vmatpush.bf16.msra.mxu0 %v836
  %904 = vmatmul.bf16.gmra.mxu0 %v855
  %v905 = vpop.f32.mrf.mxu0
  %v906 = vadd.f32 0.0, %v905
  %v907 = vpop.f32.mrf.mxu0
  %908 = vdwg.mxu0
  %909 = vmatpush.bf16.msra.mxu0 0
  %910 = vmatpush.bf16.msra.mxu0 0
  %911 = vmatpush.bf16.msra.mxu0 0
  %912 = vmatpush.bf16.msra.mxu0 0
  %913 = vmatpush.bf16.msra.mxu0 0
  %914 = vmatpush.bf16.msra.mxu0 0
  %915 = vmatpush.bf16.msra.mxu0 %v847
  %916 = vmatpush.bf16.msra.mxu0 %v837
  %917 = vmatmul.bf16.gmra.mxu0 %v855
  %v918 = vpop.f32.mrf.mxu0
  %v919 = vadd.f32 0.0, %v918
  %v920 = vpop.f32.mrf.mxu0
  %921 = vdwg.mxu0
  %922 = vmatpush.bf16.msra.mxu0 0
  %923 = vmatpush.bf16.msra.mxu0 0
  %924 = vmatpush.bf16.msra.mxu0 0
  %925 = vmatpush.bf16.msra.mxu0 0
  %926 = vmatpush.bf16.msra.mxu0 0
  %927 = vmatpush.bf16.msra.mxu0 0
  %928 = vmatpush.bf16.msra.mxu0 %v848
  %929 = vmatpush.bf16.msra.mxu0 %v838
  %930 = vmatmul.bf16.gmra.mxu0 %v855
  %v931 = vpop.f32.mrf.mxu0
  %v932 = vadd.f32 0.0, %v931
  %v933 = vpop.f32.mrf.mxu0
  %934 = vdwg.mxu0
  %935 = vmatpush.bf16.msra.mxu0 0
  %936 = vmatpush.bf16.msra.mxu0 0
  %937 = vmatpush.bf16.msra.mxu0 0
  %938 = vmatpush.bf16.msra.mxu0 0
  %939 = vmatpush.bf16.msra.mxu0 0
  %940 = vmatpush.bf16.msra.mxu0 0
  %941 = vmatpush.bf16.msra.mxu0 %v849
  %942 = vmatpush.bf16.msra.mxu0 %v839
  %943 = vmatmul.bf16.gmra.mxu0 %v855
  %v944 = vpop.f32.mrf.mxu0
  %v945 = vadd.f32 0.0, %v944
  %v946 = vpop.f32.mrf.mxu0
  %947 = vdwg.mxu0
  %948 = vmatpush.bf16.msra.mxu0 0
  %949 = vmatpush.bf16.msra.mxu0 0
  %950 = vmatpush.bf16.msra.mxu0 0
  %951 = vmatpush.bf16.msra.mxu0 0
  %952 = vmatpush.bf16.msra.mxu0 0
  %953 = vmatpush.bf16.msra.mxu0 0
  %954 = vmatpush.bf16.msra.mxu0 %v850
  %955 = vmatpush.bf16.msra.mxu0 %v840
  %956 = vmatmul.bf16.gmra.mxu0 %v855
  %v957 = vpop.f32.mrf.mxu0
  %v958 = vadd.f32 0.0, %v957
  %v959 = vpop.f32.mrf.mxu0
  %960 = vdwg.mxu0
  %961 = vmatpush.bf16.msra.mxu0 0
  %962 = vmatpush.bf16.msra.mxu0 0
  %963 = vmatpush.bf16.msra.mxu0 0
  %964 = vmatpush.bf16.msra.mxu0 0
  %965 = vmatpush.bf16.msra.mxu0 0
  %966 = vmatpush.bf16.msra.mxu0 0
  %967 = vmatpush.bf16.msra.mxu0 %v851
  %968 = vmatpush.bf16.msra.mxu0 %v841
  %969 = vmatmul.bf16.gmra.mxu0 %v855
  %v970 = vpop.f32.mrf.mxu0
  %v971 = vadd.f32 0.0, %v970
  %v972 = vpop.f32.mrf.mxu0
  %973 = vdwg.mxu0
  %974 = vmatpush.bf16.msra.mxu0 0
  %975 = vmatpush.bf16.msra.mxu0 0
  %976 = vmatpush.bf16.msra.mxu0 0
  %977 = vmatpush.bf16.msra.mxu0 0
  %978 = vmatpush.bf16.msra.mxu0 0
  %979 = vmatpush.bf16.msra.mxu0 0
  %980 = vmatpush.bf16.msra.mxu0 %v852
  %981 = vmatpush.bf16.msra.mxu0 %v842
  %982 = vmatmul.bf16.gmra.mxu0 %v855
  %v983 = vpop.f32.mrf.mxu0
  %v984 = vadd.f32 0.0, %v983
  %v985 = vpop.f32.mrf.mxu0
  %986 = vdwg.mxu0
  %v987 = vadd.f32 %v822, %v867
  %v988 = vadd.f32 %v823, %v880
  %v989 = vadd.f32 %v824, %v893
  %v990 = vadd.f32 %v825, %v906
  %v991 = vadd.f32 %v826, %v919
  %v992 = vadd.f32 %v827, %v932
  %v993 = vadd.f32 %v828, %v945
  %v994 = vadd.f32 %v829, %v958
  %v995 = vadd.f32 %v830, %v971
  %v996 = vadd.f32 %v831, %v984
  %997 = vst [vmem:[%s4] sm:$0xff] %v987
  %998 = vst [vmem:[%s4 + $0x8] sm:$0xff] %v988
  %999 = vst [vmem:[%s4 + $0x10] sm:$0xff] %v989
  %1000 = vst [vmem:[%s4 + $0x18] sm:$0xff] %v990
  %1001 = vst [vmem:[%s4 + $0x20] sm:$0xff] %v991
  %1002 = vst [vmem:[%s4 + $0x28] sm:$0xff] %v992
  %1003 = vst [vmem:[%s4 + $0x30] sm:$0xff] %v993
  %1004 = vst [vmem:[%s4 + $0x38] sm:$0xff] %v994
  %1005 = vst [vmem:[%s4 + $0x40] sm:$0xff] %v995
  %1006 = vst [vmem:[%s4 + $0x48] sm:$0xff] %v996
  // Predicated region
  $region22: #{early_exit_mobilenet_forward.1} parent=0 // pred_check
    _
  $region23: #{early_exit_mobilenet_forward.1} parent=0 // pred_check_branch
    %1008 = sbr.rel (0) target = $region25
  $region24: #{early_exit_mobilenet_forward.1} parent=0 // pred_region
    _
  $region25: #{early_exit_mobilenet_forward.1} parent=0 // pred_fallthru
    _
  // Predicated region
  $region26: #{early_exit_mobilenet_forward.1} parent=0 // pred_check
    _
  $region27: #{early_exit_mobilenet_forward.1} parent=0 // pred_check_branch
    %1010 = sbr.rel (0) target = $region29
  $region28: #{early_exit_mobilenet_forward.1} parent=0 // pred_region
    _
  $region29: #{early_exit_mobilenet_forward.1} parent=0 // pred_fallthru
    _

</llo_original>
